<compile_context>
chip_gen: v5e
topology: v5e:2x2
jax: 0.10.0
libtpu: 0.0.40
codegen_flags: <defaults>
</compile_context>

<pallas_src>
import jax
import jax.numpy as jnp
from jax.experimental import pallas as pl
from jax.experimental.pallas import tpu as pltpu


def _round_up(x, m):
    return (x + m - 1) // m * m


def bahdanau_kernel(q_ref, k_ref, wa_ref, ua_ref, b_ref, va_ref, ctx_ref, w_ref):
    # Per-grid-step refs:
    #   q_ref  : (BB, H)      query tile (query length of 1 squeezed in the wrapper)
    #   k_ref  : (BB, S, H)   keys tile
    #   wa_ref : (H, H)       Wa.weight.T  (in, out)
    #   ua_ref : (H, H)       Ua.weight.T  (in, out)
    #   b_ref  : (1, H)       folded bias  (Wa.bias + Ua.bias)
    #   va_ref : (1, H)       Va.weight row
    #   ctx_ref: (BB, H), w_ref: (BB, S)
    bb, s, h = k_ref.shape

    q = q_ref[...]                                           # (BB, H)
    k = k_ref[...]                                           # (BB, S, H)

    # Wa(query) + folded bias -> (BB, H), MXU, f32 accumulate.
    wa_q = jnp.dot(q, wa_ref[...], preferred_element_type=jnp.float32) + b_ref[...]

    # Ua(keys) as one (BB*S, H) GEMM on the MXU.
    ua_k = jnp.dot(k.reshape(bb * s, h), ua_ref[...],
                   preferred_element_type=jnp.float32).reshape(bb, s, h)

    # tanh on the EUP, f32 throughout.
    t = jnp.tanh(ua_k + wa_q[:, None, :])                    # (BB, S, H)

    # Va contraction -> lane-major scores (BB, S); softmax along the lane axis.
    scores = jnp.sum(t * va_ref[...], axis=-1)               # (BB, S)
    m = jnp.max(scores, axis=-1, keepdims=True)              # (BB, 1)
    e = jnp.exp(scores - m)                                  # (BB, S)
    denom = jnp.sum(e, axis=-1, keepdims=True)               # (BB, 1)
    w = e * pl.reciprocal(denom, approx=False)               # (BB, S)

    # context = weights @ keys, batched on the MXU (query length == 1).
    ctx = jnp.einsum("bqs,bsh->bqh", w[:, None, :].astype(k.dtype), k,
                     preferred_element_type=jnp.float32)     # (BB, 1, H)

    ctx_ref[...] = ctx[:, 0, :].astype(ctx_ref.dtype)        # (BB, H)
    w_ref[...] = w.astype(w_ref.dtype)                       # (BB, S)


def bahdanau_attention(query, keys, wa_t, ba, ua_t, bu, va_t, bv=None, *,
                       block_b=128, matmul_dtype=None):
    """query: (B, 1, H); keys: (B, S, H); Linear weights pre-transposed to (in, out).

    Returns (context (B, 1, H), weights (B, 1, S)), matching the PyTorch forward.
    `bv` is accepted for interface parity but is softmax-invariant, so it is unused.
    Pass matmul_dtype=jnp.bfloat16 on v6e/v7x for bf16 MXU operands.
    """
    B, q_len, H = query.shape
    assert q_len == 1
    S = keys.shape[1]

    mm_dtype = matmul_dtype if matmul_dtype is not None else query.dtype

    # Fold the two Linear biases; drop bv (uniform shift -> softmax-invariant).
    bias = jnp.reshape(ba + bu, (1, H)).astype(jnp.float32)
    va_row = jnp.reshape(va_t, (1, H)).astype(jnp.float32)

    # Batch tile: multiple of 8 sublanes; pad B up to a whole number of tiles.
    BB = min(_round_up(block_b, 8), _round_up(B, 8))
    B_pad = _round_up(B, BB)

    q2 = query.reshape(B, H).astype(mm_dtype)
    k3 = keys.astype(mm_dtype)
    if B_pad != B:
        q2 = jnp.pad(q2, ((0, B_pad - B), (0, 0)))
        k3 = jnp.pad(k3, ((0, B_pad - B), (0, 0), (0, 0)))

    wa = wa_t.astype(mm_dtype)
    ua = ua_t.astype(mm_dtype)

    const_spec = lambda shape: pl.BlockSpec(shape, lambda i: (0, 0))

    ctx2, w2 = pl.pallas_call(
        bahdanau_kernel,
        out_shape=(
            jax.ShapeDtypeStruct((B_pad, H), jnp.float32),
            jax.ShapeDtypeStruct((B_pad, S), jnp.float32),
        ),
        grid_spec=pltpu.PrefetchScalarGridSpec(
            num_scalar_prefetch=0,
            grid=(B_pad // BB,),
            in_specs=[
                pl.BlockSpec((BB, H), lambda i: (i, 0)),        # query (B, H)
                pl.BlockSpec((BB, S, H), lambda i: (i, 0, 0)),  # keys  (B, S, H)
                const_spec((H, H)),                             # Wa^T
                const_spec((H, H)),                             # Ua^T
                const_spec((1, H)),                             # ba + bu
                const_spec((1, H)),                             # Va weight row
            ],
            out_specs=[
                pl.BlockSpec((BB, H), lambda i: (i, 0)),        # context
                pl.BlockSpec((BB, S), lambda i: (i, 0)),        # weights
            ],
        ),
        compiler_params=pltpu.CompilerParams(
            # Batch tiles are independent -> shard across v7x's two TensorCores.
            dimension_semantics=("parallel",)),
    )(q2, k3, wa, ua, bias, va_row)

    context = ctx2[:B].reshape(B, 1, H)
    weights = w2[:B].reshape(B, 1, S)
    return context, weights


def reference(query, keys, wa_t, ba, ua_t, bu, va_t, bv):
    # Pure-JAX reference mirroring the PyTorch forward (including bv).
    scores = jnp.tanh(query @ wa_t + ba + keys @ ua_t + bu) @ va_t + bv   # (B, S, 1)
    scores = jnp.transpose(scores, (0, 2, 1))                             # (B, 1, S)
    weights = jax.nn.softmax(scores, axis=-1)
    context = jnp.einsum("bqs,bsh->bqh", weights, keys)
    return context, weights


if __name__ == "__main__":
    B, S, H = 2, 8, 32
    key = jax.random.PRNGKey(0)
    ks = jax.random.split(key, 8)

    # Deterministic synthetic parameters (PyTorch-Linear-like uniform init).
    bound = 1.0 / jnp.sqrt(H)
    wa_t = jax.random.uniform(ks[0], (H, H), jnp.float32, -bound, bound)  # Wa.weight.T
    ba = jax.random.uniform(ks[1], (1, H), jnp.float32, -bound, bound)    # Wa.bias
    ua_t = jax.random.uniform(ks[2], (H, H), jnp.float32, -bound, bound)  # Ua.weight.T
    bu = jax.random.uniform(ks[3], (1, H), jnp.float32, -bound, bound)    # Ua.bias
    va_t = jax.random.uniform(ks[4], (H, 1), jnp.float32, -bound, bound)  # Va.weight.T
    bv = jax.random.uniform(ks[5], (1, 1), jnp.float32, -bound, bound)    # Va.bias

    query = jax.random.normal(ks[6], (B, 1, H), jnp.float32)
    keys = jax.random.normal(ks[7], (B, S, H), jnp.float32)

    context, weights = bahdanau_attention(query, keys, wa_t, ba, ua_t, bu, va_t, bv)
    context = jax.block_until_ready(context)
    weights = jax.block_until_ready(weights)

    ctx_ref, w_ref = reference(query, keys, wa_t, ba, ua_t, bu, va_t, bv)
    assert context.shape == (B, 1, H) and weights.shape == (B, 1, S)
    assert jnp.allclose(context, ctx_ref, atol=1e-5, rtol=1e-5)
    assert jnp.allclose(weights, w_ref, atol=1e-5, rtol=1e-5)

    print("KERNEL_OK")
</pallas_src>

<mosaic_0001>
module attributes {stable_mosaic.version = 11 : i64} {
  func.func @bahdanau_kernel(%arg0: i32, %arg1: memref<8x32xf32, #tpu.memory_space<vmem>>, %arg2: memref<8x8x32xf32, #tpu.memory_space<vmem>>, %arg3: memref<32x32xf32, #tpu.memory_space<vmem>>, %arg4: memref<32x32xf32, #tpu.memory_space<vmem>>, %arg5: memref<1x32xf32, #tpu.memory_space<vmem>>, %arg6: memref<1x32xf32, #tpu.memory_space<vmem>>, %arg7: memref<8x32xf32, #tpu.memory_space<vmem>>, %arg8: memref<8x8xf32, #tpu.memory_space<vmem>>) attributes {dimension_semantics = [#tpu.dimension_semantics<parallel>], iteration_bounds = array<i64: 1>, scalar_prefetch = 0 : i64, scratch_operands = 0 : i64, tpu.core_type = #tpu.core_type<tc>, window_params = [{transform_indices = @transform_0, window_bounds = array<i64: 8, 32>}, {transform_indices = @transform_1, window_bounds = array<i64: 8, 8, 32>}, {pipeline_mode = #tpu.pipeline_mode<synchronous>, transform_indices = @transform_2, window_bounds = array<i64: 32, 32>}, {pipeline_mode = #tpu.pipeline_mode<synchronous>, transform_indices = @transform_3, window_bounds = array<i64: 32, 32>}, {pipeline_mode = #tpu.pipeline_mode<synchronous>, transform_indices = @transform_4, window_bounds = array<i64: 1, 32>}, {pipeline_mode = #tpu.pipeline_mode<synchronous>, transform_indices = @transform_5, window_bounds = array<i64: 1, 32>}, {transform_indices = @transform_6, window_bounds = array<i64: 8, 32>}, {transform_indices = @transform_7, window_bounds = array<i64: 8, 8>}]} {
    %c0 = arith.constant 0 : index
    %c0_0 = arith.constant 0 : index
    %0 = vector.load %arg1[%c0, %c0_0] : memref<8x32xf32, #tpu.memory_space<vmem>>, vector<8x32xf32>
    %c0_1 = arith.constant 0 : index
    %c0_2 = arith.constant 0 : index
    %c0_3 = arith.constant 0 : index
    %1 = vector.load %arg2[%c0_1, %c0_2, %c0_3] : memref<8x8x32xf32, #tpu.memory_space<vmem>>, vector<8x8x32xf32>
    %c0_4 = arith.constant 0 : index
    %c0_5 = arith.constant 0 : index
    %2 = vector.load %arg3[%c0_4, %c0_5] : memref<32x32xf32, #tpu.memory_space<vmem>>, vector<32x32xf32>
    %cst = arith.constant dense<0.000000e+00> : vector<8x32xf32>
    %3 = tpu.matmul %0, %2, %cst {dimension_numbers = #tpu.dot_dimension_numbers<[1], [0], [0], [1], [0, 0, 1, 1], [], []>} : vector<8x32xf32>, vector<32x32xf32>, vector<8x32xf32> -> vector<8x32xf32>
    %c0_6 = arith.constant 0 : index
    %c0_7 = arith.constant 0 : index
    %4 = vector.load %arg5[%c0_6, %c0_7] : memref<1x32xf32, #tpu.memory_space<vmem>>, vector<1x32xf32>
    %5 = vector.broadcast %4 : vector<1x32xf32> to vector<8x32xf32>
    %6 = arith.addf %3, %5 : vector<8x32xf32>
    %7 = vector.shape_cast %1 : vector<8x8x32xf32> to vector<64x32xf32>
    %c0_8 = arith.constant 0 : index
    %c0_9 = arith.constant 0 : index
    %8 = vector.load %arg4[%c0_8, %c0_9] : memref<32x32xf32, #tpu.memory_space<vmem>>, vector<32x32xf32>
    %cst_10 = arith.constant dense<0.000000e+00> : vector<64x32xf32>
    %9 = tpu.matmul %7, %8, %cst_10 {dimension_numbers = #tpu.dot_dimension_numbers<[1], [0], [0], [1], [0, 0, 1, 1], [], []>} : vector<64x32xf32>, vector<32x32xf32>, vector<64x32xf32> -> vector<64x32xf32>
    %10 = vector.shape_cast %9 : vector<64x32xf32> to vector<8x8x32xf32>
    %11 = vector.shape_cast %6 : vector<8x32xf32> to vector<8x1x32xf32>
    %12 = vector.broadcast %11 : vector<8x1x32xf32> to vector<8x8x32xf32>
    %13 = arith.addf %10, %12 : vector<8x8x32xf32>
    %14 = math.tanh %13 : vector<8x8x32xf32>
    %c0_11 = arith.constant 0 : index
    %c0_12 = arith.constant 0 : index
    %15 = vector.load %arg6[%c0_11, %c0_12] : memref<1x32xf32, #tpu.memory_space<vmem>>, vector<1x32xf32>
    %16 = vector.shape_cast %15 : vector<1x32xf32> to vector<1x1x32xf32>
    %17 = vector.broadcast %16 : vector<1x1x32xf32> to vector<8x8x32xf32>
    %18 = arith.mulf %14, %17 : vector<8x8x32xf32>
    %cst_13 = arith.constant dense<0.000000e+00> : vector<8x8xf32>
    %19 = vector.multi_reduction <add>, %18, %cst_13 [2] : vector<8x8x32xf32> to vector<8x8xf32>
    %cst_14 = arith.constant dense<0xFF800000> : vector<8xf32>
    %20 = vector.multi_reduction <maximumf>, %19, %cst_14 [1] : vector<8x8xf32> to vector<8xf32>
    %21 = vector.shape_cast %20 : vector<8xf32> to vector<8x1xf32>
    %22 = vector.broadcast %21 : vector<8x1xf32> to vector<8x8xf32>
    %23 = arith.subf %19, %22 : vector<8x8xf32>
    %24 = math.exp %23 : vector<8x8xf32>
    %cst_15 = arith.constant dense<0.000000e+00> : vector<8xf32>
    %25 = vector.multi_reduction <add>, %24, %cst_15 [1] : vector<8x8xf32> to vector<8xf32>
    %26 = vector.shape_cast %25 : vector<8xf32> to vector<8x1xf32>
    %27 = tpu.reciprocal %26 : vector<8x1xf32> -> vector<8x1xf32>
    %28 = vector.broadcast %27 : vector<8x1xf32> to vector<8x8xf32>
    %29 = arith.mulf %24, %28 : vector<8x8xf32>
    %30 = vector.shape_cast %29 : vector<8x8xf32> to vector<8x1x8xf32>
    "tpu.trace_start"() <{level = 10 : i32, message = "bqs,bsh->bqh"}> : () -> ()
    %cst_16 = arith.constant dense<0.000000e+00> : vector<8x1x32xf32>
    %31 = tpu.matmul %30, %1, %cst_16 {dimension_numbers = #tpu.dot_dimension_numbers<[2], [1], [1], [2], [0, 0, 0, 1, 1, 2], [0], [0]>} : vector<8x1x8xf32>, vector<8x8x32xf32>, vector<8x1x32xf32> -> vector<8x1x32xf32>
    "tpu.trace_stop"() : () -> ()
    %32 = vector.shape_cast %31 : vector<8x1x32xf32> to vector<8x32xf32>
    %c0_17 = arith.constant 0 : index
    %c0_18 = arith.constant 0 : index
    %33 = vector.load %arg7[%c0_17, %c0_18] : memref<8x32xf32, #tpu.memory_space<vmem>>, vector<8x32xf32>
    tpu.vector_store %arg7[%c0_17, %c0_18], %32 {strides = array<i32>} : memref<8x32xf32, #tpu.memory_space<vmem>>, vector<8x32xf32>,
    %c0_19 = arith.constant 0 : index
    %c0_20 = arith.constant 0 : index
    %34 = vector.load %arg8[%c0_19, %c0_20] : memref<8x8xf32, #tpu.memory_space<vmem>>, vector<8x8xf32>
    tpu.vector_store %arg8[%c0_19, %c0_20], %29 {strides = array<i32>} : memref<8x8xf32, #tpu.memory_space<vmem>>, vector<8x8xf32>,
    return
  }
  func.func @transform_0(%arg0: i32) -> (i32, i32) {
    %c0_i32 = arith.constant 0 : i32
    %c0_i32_0 = arith.constant 0 : i32
    return %arg0, %c0_i32 : i32, i32
  }
  func.func @transform_1(%arg0: i32) -> (i32, i32, i32) {
    %c0_i32 = arith.constant 0 : i32
    %c0_i32_0 = arith.constant 0 : i32
    %c0_i32_1 = arith.constant 0 : i32
    return %arg0, %c0_i32, %c0_i32_0 : i32, i32, i32
  }
  func.func @transform_2(%arg0: i32) -> (i32, i32) {
    %c0_i32 = arith.constant 0 : i32
    %c0_i32_0 = arith.constant 0 : i32
    %c0_i32_1 = arith.constant 0 : i32
    return %c0_i32, %c0_i32_0 : i32, i32
  }
  func.func @transform_3(%arg0: i32) -> (i32, i32) {
    %c0_i32 = arith.constant 0 : i32
    %c0_i32_0 = arith.constant 0 : i32
    %c0_i32_1 = arith.constant 0 : i32
    return %c0_i32, %c0_i32_0 : i32, i32
  }
  func.func @transform_4(%arg0: i32) -> (i32, i32) {
    %c0_i32 = arith.constant 0 : i32
    %c0_i32_0 = arith.constant 0 : i32
    %c0_i32_1 = arith.constant 0 : i32
    return %c0_i32, %c0_i32_0 : i32, i32
  }
  func.func @transform_5(%arg0: i32) -> (i32, i32) {
    %c0_i32 = arith.constant 0 : i32
    %c0_i32_0 = arith.constant 0 : i32
    %c0_i32_1 = arith.constant 0 : i32
    return %c0_i32, %c0_i32_0 : i32, i32
  }
  func.func @transform_6(%arg0: i32) -> (i32, i32) {
    %c0_i32 = arith.constant 0 : i32
    %c0_i32_0 = arith.constant 0 : i32
    return %arg0, %c0_i32 : i32, i32
  }
  func.func @transform_7(%arg0: i32) -> (i32, i32) {
    %c0_i32 = arith.constant 0 : i32
    %c0_i32_0 = arith.constant 0 : i32
    return %arg0, %c0_i32 : i32, i32
  }
}

</mosaic_0001>

<llo_original>
// kernel: tpu_custom_call.1
$region0: #{tpu_custom_call.1}
  #allocation0 [shape = 'u32[]', space=smem, size = 0x4, offset = 0x4, fixed_abs, tag = 'smem constant byte address 0x4 - core index']
  #allocation1 [shape = 'u32[72,128]{1,0:T(1,128)}', space=vmem, size = 0x9000, scoped, tag = 'internal scratch']
  %s0 = inlined_call_operand.hbm [shape: f32[8,32], index: 0, kind: input, shape index: {}]
  %s1 = inlined_call_operand.hbm [shape: f32[8,8,32], index: 1, kind: input, shape index: {}]
  %s2 = inlined_call_operand.hbm [shape: f32[32,32], index: 2, kind: input, shape index: {}]
  %s3 = inlined_call_operand.hbm [shape: f32[32,32], index: 3, kind: input, shape index: {}]
  %s4 = inlined_call_operand.vmem [shape: f32[1,32], index: 4, kind: input, shape index: {}]
  %s5 = inlined_call_operand.vmem [shape: f32[1,32], index: 5, kind: input, shape index: {}]
  %s6 = inlined_call_operand.hbm [shape: f32[8,32], index: 6, kind: output, shape index: {0}]
  %s7 = inlined_call_operand.hbm [shape: f32[8,8], index: 7, kind: output, shape index: {1}]
  %8 = xla_tuple %s6, %s7
  %s9 = sld [smem:[#allocation0]]
  $region58: #{tpu_custom_call.1} parent=0
    _
  %s11 = ssub.s32 1, %s9
  %s12 = scalar_select 0, %s11, %s9
  $region1: #{tpu_custom_call.1} parent=0
    #allocation2 [shape = 'u8[4096]{0}', space=vmem, size = 0x1000, scoped, tag = 'input window, operand 0, single buffered']
    #allocation3 [shape = 's32[1]{0}', space=sflag, size = 0x4, scoped, tag = 'scoped memory for tpu_custom_call.1']
    #allocation4 [shape = 's32[1]{0}', space=sflag, size = 0x4, scoped, tag = 'scoped memory for tpu_custom_call.1']
    #allocation5 [shape = 'u8[32768]{0}', space=vmem, size = 0x8000, scoped, tag = 'input window, operand 1, single buffered']
    #allocation6 [shape = 's32[1]{0}', space=sflag, size = 0x4, scoped, tag = 'scoped memory for tpu_custom_call.1']
    #allocation7 [shape = 'u8[16384]{0}', space=vmem, size = 0x4000, scoped, tag = 'input window, operand 2, single buffered']
    #allocation8 [shape = 'u8[16384]{0}', space=vmem, size = 0x4000, scoped, tag = 'input window, operand 3, single buffered']
    #allocation9 [shape = 's32[1]{0}', space=sflag, size = 0x4, scoped, tag = 'scoped memory for tpu_custom_call.1']
    #allocation10 [shape = 'u8[4096]{0}', space=vmem, size = 0x1000, scoped, tag = 'output window, operand 0, single buffered']
    #allocation11 [shape = 'u8[4096]{0}', space=vmem, size = 0x1000, scoped, tag = 'output window, operand 1, single buffered']
    #allocation12 [shape = 's32[1]{0}', space=sflag, size = 0x4, scoped, tag = 'scoped memory for tpu_custom_call.1']
    %13 = vsyncpa [#allocation3], 0
    %14 = vsyncpa [#allocation6], 0
    %15 = vsyncpa [#allocation9], 0
    %16 = vsyncpa [#allocation4], 0
    %17 = vsyncpa [#allocation12], 0
    // Predicated region
    $region2: #{tpu_custom_call.1} parent=1 // pred_check
      _
    $region3: #{tpu_custom_call.1} parent=1 // pred_check_branch
      %19 = sbr.rel (0) target = $region5
    $region4: #{tpu_custom_call.1} parent=1 // pred_region
      %21 = vsyncadd [#allocation3], 0
      %s23 = sshll.u32 %s0, 4
      %s24 = int_to_ptr.hbm [resolvable:$true] %s23
      %s25 = sshll.u32 [#allocation2], 4
      %s26 = int_to_ptr.vmem [resolvable:$true] %s25
      %28 = dma.hbm_to_vmem [thread:$0]  %s24, 128, %s26, [#allocation3]
    $region5: #{tpu_custom_call.1} parent=1 // pred_fallthru
      _
    // Predicated region
    $region6: #{tpu_custom_call.1} parent=1 // pred_check
      _
    $region7: #{tpu_custom_call.1} parent=1 // pred_check_branch
      %30 = sbr.rel (0) target = $region9
    $region8: #{tpu_custom_call.1} parent=1 // pred_region
      %32 = vsyncadd [#allocation6], 0
      %s33 = sshll.u32 %s1, 4
      %s34 = int_to_ptr.hbm [resolvable:$true] %s33
      %s35 = sshll.u32 [#allocation5], 4
      %s36 = int_to_ptr.vmem [resolvable:$true] %s35
      %41 = dma.hbm_to_vmem [thread:$0]  %s34, 1024, %s36, [#allocation6], 128, 128, 8
    $region9: #{tpu_custom_call.1} parent=1 // pred_fallthru
      _
    // Predicated region
    $region10: #{tpu_custom_call.1} parent=1 // pred_check
      _
    $region11: #{tpu_custom_call.1} parent=1 // pred_check_branch
      %43 = sbr.rel (0) target = $region13
    $region12: #{tpu_custom_call.1} parent=1 // pred_region
      %45 = vsyncadd [#allocation6], 0
      %s46 = sshll.u32 %s2, 4
      %s47 = int_to_ptr.hbm [resolvable:$true] %s46
      %s48 = sshll.u32 [#allocation7], 4
      %s49 = int_to_ptr.vmem [resolvable:$true] %s48
      %54 = dma.hbm_to_vmem [thread:$0]  %s47, 512, %s49, [#allocation6], 128, 128, 8
    $region13: #{tpu_custom_call.1} parent=1 // pred_fallthru
      _
    // Predicated region
    $region14: #{tpu_custom_call.1} parent=1 // pred_check
      _
    $region15: #{tpu_custom_call.1} parent=1 // pred_check_branch
      %56 = sbr.rel (0) target = $region17
    $region16: #{tpu_custom_call.1} parent=1 // pred_region
      %58 = vsyncadd [#allocation9], 0
      %s59 = sshll.u32 %s3, 4
      %s60 = int_to_ptr.hbm [resolvable:$true] %s59
      %s61 = sshll.u32 [#allocation8], 4
      %s62 = int_to_ptr.vmem [resolvable:$true] %s61
      %67 = dma.hbm_to_vmem [thread:$0]  %s60, 512, %s62, [#allocation9], 128, 128, 8
    $region17: #{tpu_custom_call.1} parent=1 // pred_fallthru
      _
    // Predicated region
    $region18: #{tpu_custom_call.1} parent=1 // pred_check
      _
    $region19: #{tpu_custom_call.1} parent=1 // pred_check_branch
      %69 = sbr.rel (0) target = $region21
    $region20: #{tpu_custom_call.1} parent=1 // pred_region
      _
    $region21: #{tpu_custom_call.1} parent=1 // pred_fallthru
      _
    // Predicated region
    $region22: #{tpu_custom_call.1} parent=1 // pred_check
      _
    $region23: #{tpu_custom_call.1} parent=1 // pred_check_branch
      %71 = sbr.rel (0) target = $region25
    $region24: #{tpu_custom_call.1} parent=1 // pred_region
      _
    $region25: #{tpu_custom_call.1} parent=1 // pred_fallthru
      _
    // Predicated region
    $region26: #{tpu_custom_call.1} parent=1 // pred_check
      _
    $region27: #{tpu_custom_call.1} parent=1 // pred_check_branch
      %73 = sbr.rel (0) target = $region29
    $region28: #{tpu_custom_call.1} parent=1 // pred_region
      %75 = dma.done [#allocation3], 128
    $region29: #{tpu_custom_call.1} parent=1 // pred_fallthru
      _
    // Predicated region
    $region30: #{tpu_custom_call.1} parent=1 // pred_check
      _
    $region31: #{tpu_custom_call.1} parent=1 // pred_check_branch
      %77 = sbr.rel (0) target = $region33
    $region32: #{tpu_custom_call.1} parent=1 // pred_region
      %79 = dma.done [#allocation6], 1024
    $region33: #{tpu_custom_call.1} parent=1 // pred_fallthru
      _
    // Predicated region
    $region34: #{tpu_custom_call.1} parent=1 // pred_check
      _
    $region35: #{tpu_custom_call.1} parent=1 // pred_check_branch
      %81 = sbr.rel (0) target = $region37
    $region36: #{tpu_custom_call.1} parent=1 // pred_region
      %83 = dma.done [#allocation6], 512
    $region37: #{tpu_custom_call.1} parent=1 // pred_fallthru
      _
    // Predicated region
    $region38: #{tpu_custom_call.1} parent=1 // pred_check
      _
    $region39: #{tpu_custom_call.1} parent=1 // pred_check_branch
      %85 = sbr.rel (0) target = $region41
    $region40: #{tpu_custom_call.1} parent=1 // pred_region
      %87 = dma.done [#allocation9], 512
    $region41: #{tpu_custom_call.1} parent=1 // pred_fallthru
      _
    %v88 = vld [vmem:[#allocation2] sm:$0xff]
    %v89 = vld [vmem:[#allocation5] sm:$0xff]
    %v90 = vld [vmem:[#allocation5 + $0x8] sm:$0xff]
    %v91 = vld [vmem:[#allocation5 + $0x10] sm:$0xff]
    %v92 = vld [vmem:[#allocation5 + $0x18] sm:$0xff]
    %v93 = vld [vmem:[#allocation5 + $0x20] sm:$0xff]
    %v94 = vld [vmem:[#allocation5 + $0x28] sm:$0xff]
    %v95 = vld [vmem:[#allocation5 + $0x30] sm:$0xff]
    %v96 = vld [vmem:[#allocation5 + $0x38] sm:$0xff]
    %v97 = vld [vmem:[#allocation7] sm:$0xff]
    %v98 = vld [vmem:[#allocation7 + $0x8] sm:$0xff]
    %v99 = vld [vmem:[#allocation7 + $0x10] sm:$0xff]
    %v100 = vld [vmem:[#allocation7 + $0x18] sm:$0xff]
    %v101 = vld [vmem:[%s4] sm:$0x1]
    %v103 = vperm.slane %v101, 0
    %vm105 = vcmask 261120
    %v107 = vsel %vm105, %v88, 0
    %109 = vmatpush.msra.mxu0 0.0
    %110 = vmatpush.msra.mxu0 0.0
    %111 = vmatpush.msra.mxu0 0.0
    %112 = vmatpush.msra.mxu0 0.0
    %113 = vmatpush.msra.mxu0 0.0
    %114 = vmatpush.msra.mxu0 0.0
    %115 = vmatpush.msra.mxu0 0.0
    %116 = vmatpush.msra.mxu0 0.0
    %117 = vmatpush.msra.mxu0 0.0
    %118 = vmatpush.msra.mxu0 0.0
    %119 = vmatpush.msra.mxu0 0.0
    %120 = vmatpush.msra.mxu0 0.0
    %121 = vmatpush.msra.mxu0 %v100
    %122 = vmatpush.msra.mxu0 %v99
    %123 = vmatpush.msra.mxu0 %v98
    %124 = vmatpush.msra.mxu0 %v97
    %125 = vmatmul.f32.gmra.mxu0 %v107
    %v126 = vpop.f32.mrf.mxu0
    %v127 = vadd.f32 %v103, %v126
    %128 = vdwg.mxu0
    %v129 = vld [vmem:[#allocation8] sm:$0xff]
    %v130 = vld [vmem:[#allocation8 + $0x8] sm:$0xff]
    %v131 = vld [vmem:[#allocation8 + $0x10] sm:$0xff]
    %v132 = vld [vmem:[#allocation8 + $0x18] sm:$0xff]
    %v134 = vsel %vm105, %v89, 0
    %v137 = vsel %vm105, %v90, 0
    %v140 = vsel %vm105, %v91, 0
    %v143 = vsel %vm105, %v92, 0
    %v146 = vsel %vm105, %v93, 0
    %v149 = vsel %vm105, %v94, 0
    %v152 = vsel %vm105, %v95, 0
    %v155 = vsel %vm105, %v96, 0
    %157 = vmatpush.msra.mxu0 0.0
    %158 = vmatpush.msra.mxu0 0.0
    %159 = vmatpush.msra.mxu0 0.0
    %160 = vmatpush.msra.mxu0 0.0
    %161 = vmatpush.msra.mxu0 0.0
    %162 = vmatpush.msra.mxu0 0.0
    %163 = vmatpush.msra.mxu0 0.0
    %164 = vmatpush.msra.mxu0 0.0
    %165 = vmatpush.msra.mxu0 0.0
    %166 = vmatpush.msra.mxu0 0.0
    %167 = vmatpush.msra.mxu0 0.0
    %168 = vmatpush.msra.mxu0 0.0
    %169 = vmatpush.msra.mxu0 %v132
    %170 = vmatpush.msra.mxu0 %v131
    %171 = vmatpush.msra.mxu0 %v130
    %172 = vmatpush.msra.mxu0 %v129
    %173 = vmatmul.f32.gmra.mxu0 %v134
    %v174 = vpop.f32.mrf.mxu0
    %v175 = vadd.f32 0.0, %v174
    %176 = vmatmul.f32.gmra.mxu0 %v137
    %v177 = vpop.f32.mrf.mxu0
    %v178 = vadd.f32 0.0, %v177
    %179 = vmatmul.f32.gmra.mxu0 %v140
    %v180 = vpop.f32.mrf.mxu0
    %v181 = vadd.f32 0.0, %v180
    %182 = vmatmul.f32.gmra.mxu0 %v143
    %v183 = vpop.f32.mrf.mxu0
    %v184 = vadd.f32 0.0, %v183
    %185 = vmatmul.f32.gmra.mxu0 %v146
    %v186 = vpop.f32.mrf.mxu0
    %v187 = vadd.f32 0.0, %v186
    %188 = vmatmul.f32.gmra.mxu0 %v149
    %v189 = vpop.f32.mrf.mxu0
    %v190 = vadd.f32 0.0, %v189
    %191 = vmatmul.f32.gmra.mxu0 %v152
    %v192 = vpop.f32.mrf.mxu0
    %v193 = vadd.f32 0.0, %v192
    %194 = vmatmul.f32.gmra.mxu0 %v155
    %v195 = vpop.f32.mrf.mxu0
    %v196 = vadd.f32 0.0, %v195
    %197 = vdwg.mxu0
    %v199 = vrot.slane %v127, 1
    %v200 = vrot.slane %v127, 2
    %v201 = vrot.slane %v127, 3
    %v202 = vrot.slane %v127, 4
    %v203 = vrot.slane %v127, 5
    %v204 = vrot.slane %v127, 6
    %v205 = vrot.slane %v127, 7
    %v206 = vperm.slane %v127, 0
    %v207 = vperm.slane %v199, 0
    %v208 = vperm.slane %v200, 0
    %v209 = vperm.slane %v201, 0
    %v210 = vperm.slane %v202, 0
    %v211 = vperm.slane %v203, 0
    %v212 = vperm.slane %v204, 0
    %v213 = vperm.slane %v205, 0
    %v222 = vadd.f32 %v175, %v206
    %v223 = vadd.f32 %v178, %v207
    %v224 = vadd.f32 %v181, %v208
    %v225 = vadd.f32 %v184, %v209
    %v226 = vadd.f32 %v187, %v210
    %v227 = vadd.f32 %v190, %v211
    %v228 = vadd.f32 %v193, %v212
    %v229 = vadd.f32 %v196, %v213
    %v230 = vtanh.pop %v222
    %v231 = vtanh.pop %v223
    %v232 = vtanh.pop %v224
    %v233 = vtanh.pop %v225
    %v234 = vtanh.pop %v226
    %v235 = vtanh.pop %v227
    %v236 = vtanh.pop %v228
    %v237 = vtanh.pop %v229
    %v238 = vld [vmem:[%s5] sm:$0x1]
    %v240 = vperm.slane %v238, 0
    %v242 = vmul.f32 %v230, %v240
    %v243 = vmul.f32 %v231, %v240
    %v244 = vmul.f32 %v232, %v240
    %v245 = vmul.f32 %v233, %v240
    %v246 = vmul.f32 %v234, %v240
    %v247 = vmul.f32 %v235, %v240
    %v248 = vmul.f32 %v236, %v240
    %v249 = vmul.f32 %v237, %v240
    %v250 = vsel %vm105, %v242, 0.0
    %251 = vadd.xlane.f32.xlu0 %v250
    %v252 = vpop.xlane.xlu0 %251
    %v253 = vsel %vm105, %v243, 0.0
    %254 = vadd.xlane.f32.xlu0 %v253
    %v255 = vpop.xlane.xlu0 %254
    %v256 = vsel %vm105, %v244, 0.0
    %257 = vadd.xlane.f32.xlu0 %v256
    %v258 = vpop.xlane.xlu0 %257
    %v259 = vsel %vm105, %v245, 0.0
    %260 = vadd.xlane.f32.xlu0 %v259
    %v261 = vpop.xlane.xlu0 %260
    %v262 = vsel %vm105, %v246, 0.0
    %263 = vadd.xlane.f32.xlu0 %v262
    %v264 = vpop.xlane.xlu0 %263
    %v265 = vsel %vm105, %v247, 0.0
    %266 = vadd.xlane.f32.xlu0 %v265
    %v267 = vpop.xlane.xlu0 %266
    %v268 = vsel %vm105, %v248, 0.0
    %269 = vadd.xlane.f32.xlu0 %v268
    %v270 = vpop.xlane.xlu0 %269
    %v271 = vsel %vm105, %v249, 0.0
    %272 = vadd.xlane.f32.xlu0 %v271
    %v273 = vpop.xlane.xlu0 %272
    %v282 = vlaneseq
    %v283 = vand.u32 %v282, 127
    %v284 = vperm.slane %v252, %v283
    %v285 = vperm.slane %v255, %v283
    %v286 = vperm.slane %v258, %v283
    %v287 = vperm.slane %v261, %v283
    %v288 = vperm.slane %v264, %v283
    %v289 = vperm.slane %v267, %v283
    %v290 = vperm.slane %v270, %v283
    %v291 = vperm.slane %v273, %v283
    %vm292 = vcmask 1041409
    %v293 = vsel %vm292, %v285, %v284
    %vm294 = vcmask 1042434
    %v295 = vsel %vm294, %v286, %v293
    %vm296 = vcmask 1043459
    %v297 = vsel %vm296, %v287, %v295
    %vm298 = vcmask 1044484
    %v299 = vsel %vm298, %v288, %v297
    %vm300 = vcmask 1045509
    %v301 = vsel %vm300, %v289, %v299
    %vm302 = vcmask 1046534
    %v303 = vsel %vm302, %v290, %v301
    %vm304 = vcmask 1047559
    %v305 = vsel %vm304, %v291, %v303
    %vm307 = vcmask 64512
    %v308 = vsel %vm307, %v305, -inf
    %309 = vmax.xlane.f32.xlu0 %v308
    %v310 = vpop.xlane.xlu0 %309
    %v312 = vperm.slane %v310, 0
    %v313 = vperm.slane %v310, 1
    %v314 = vperm.slane %v310, 2
    %v315 = vperm.slane %v310, 3
    %v316 = vperm.slane %v310, 4
    %v317 = vperm.slane %v310, 5
    %v318 = vperm.slane %v310, 6
    %v319 = vperm.slane %v310, 7
    %v328 = vsub.f32 %v252, %v312
    %v329 = vsub.f32 %v255, %v313
    %v330 = vsub.f32 %v258, %v314
    %v331 = vsub.f32 %v261, %v315
    %v332 = vsub.f32 %v264, %v316
    %v333 = vsub.f32 %v267, %v317
    %v334 = vsub.f32 %v270, %v318
    %v335 = vsub.f32 %v273, %v319
    %v336 = vmul.f32 %v328, 1.442695
    %v337 = vpow.pop %v336
    %v338 = vmul.f32 %v329, 1.442695
    %v339 = vpow.pop %v338
    %v340 = vmul.f32 %v330, 1.442695
    %v341 = vpow.pop %v340
    %v342 = vmul.f32 %v331, 1.442695
    %v343 = vpow.pop %v342
    %v344 = vmul.f32 %v332, 1.442695
    %v345 = vpow.pop %v344
    %v346 = vmul.f32 %v333, 1.442695
    %v347 = vpow.pop %v346
    %v348 = vmul.f32 %v334, 1.442695
    %v349 = vpow.pop %v348
    %v350 = vmul.f32 %v335, 1.442695
    %v351 = vpow.pop %v350
    %360 = vset.pattern.permute.xlu0 0
    %361 = vperm.xlu0 %360, %v337
    %v362 = vpop.permute.xlu0 %361
    %363 = vset.pattern.permute.xlu0 0
    %364 = vperm.xlu0 %363, %v339
    %v365 = vpop.permute.xlu0 %364
    %366 = vset.pattern.permute.xlu0 0
    %367 = vperm.xlu0 %366, %v341
    %v368 = vpop.permute.xlu0 %367
    %369 = vset.pattern.permute.xlu0 0
    %370 = vperm.xlu0 %369, %v343
    %v371 = vpop.permute.xlu0 %370
    %372 = vset.pattern.permute.xlu0 0
    %373 = vperm.xlu0 %372, %v345
    %v374 = vpop.permute.xlu0 %373
    %375 = vset.pattern.permute.xlu0 0
    %376 = vperm.xlu0 %375, %v347
    %v377 = vpop.permute.xlu0 %376
    %378 = vset.pattern.permute.xlu0 0
    %379 = vperm.xlu0 %378, %v349
    %v380 = vpop.permute.xlu0 %379
    %381 = vset.pattern.permute.xlu0 0
    %382 = vperm.xlu0 %381, %v351
    %v383 = vpop.permute.xlu0 %382
    %v384 = vperm.slane %v362, %v283
    %v385 = vperm.slane %v365, %v283
    %v386 = vperm.slane %v368, %v283
    %v387 = vperm.slane %v371, %v283
    %v388 = vperm.slane %v374, %v283
    %v389 = vperm.slane %v377, %v283
    %v390 = vperm.slane %v380, %v283
    %v391 = vperm.slane %v383, %v283
    %v392 = vsel %vm292, %v385, %v384
    %v393 = vsel %vm294, %v386, %v392
    %v394 = vsel %vm296, %v387, %v393
    %v395 = vsel %vm298, %v388, %v394
    %v396 = vsel %vm300, %v389, %v395
    %v397 = vsel %vm302, %v390, %v396
    %v398 = vsel %vm304, %v391, %v397
    %v400 = vsel %vm307, %v398, 0.0
    %401 = vadd.xlane.f32.xlu0 %v400
    %v402 = vpop.xlane.xlu0 %401
    %v403 = vrcp.pop %v402
    %v404 = vmul.f32 %v402, %v403
    %v405 = vsub.f32 1.0, %v404
    %v406 = vmul.f32 %v403, %v405
    %v407 = vadd.f32 %v403, %v406
    %vm408 = vweird.f32 %v402
    %vm409 = vweird.f32 %v403
    %vm410 = vmor %vm408, %vm409
    %v411 = vsel %vm410, %v403, %v407
    %v412 = vand.u32 2147483647, %v402
    %vm413 = vcmp.eq.f32.partialorder %v412, 8.507059e+37
    %v414 = vand.u32 %v402, 2147483648
    %v415 = vor.u32 1.1754944e-38, %v414
    %v416 = vsel %vm413, %v415, %v411
    %v418 = vperm.slane %v416, 0
    %v419 = vperm.slane %v416, 1
    %v420 = vperm.slane %v416, 2
    %v421 = vperm.slane %v416, 3
    %v422 = vperm.slane %v416, 4
    %v423 = vperm.slane %v416, 5
    %v424 = vperm.slane %v416, 6
    %v425 = vperm.slane %v416, 7
    %v434 = vmul.f32 %v337, %v418
    %v435 = vmul.f32 %v339, %v419
    %v436 = vmul.f32 %v341, %v420
    %v437 = vmul.f32 %v343, %v421
    %v438 = vmul.f32 %v345, %v422
    %v439 = vmul.f32 %v347, %v423
    %v440 = vmul.f32 %v349, %v424
    %v441 = vmul.f32 %v351, %v425
    %443 = vset.pattern.permute.xlu0 0
    %444 = vperm.xlu0 %443, %v434
    %v445 = vpop.permute.xlu0 %444
    %v446 = vperm.slane %v445, %v283
    %v447 = vsel %vm307, %v446, 0
    %449 = vmatpush.msra.mxu0 0.0
    %450 = vmatpush.msra.mxu0 0.0
    %451 = vmatpush.msra.mxu0 0.0
    %452 = vmatpush.msra.mxu0 0.0
    %453 = vmatpush.msra.mxu0 0.0
    %454 = vmatpush.msra.mxu0 0.0
    %455 = vmatpush.msra.mxu0 0.0
    %456 = vmatpush.msra.mxu0 0.0
    %457 = vmatpush.msra.mxu0 0.0
    %458 = vmatpush.msra.mxu0 0.0
    %459 = vmatpush.msra.mxu0 0.0
    %460 = vmatpush.msra.mxu0 0.0
    %461 = vmatpush.msra.mxu0 0.0
    %462 = vmatpush.msra.mxu0 0.0
    %463 = vmatpush.msra.mxu0 0.0
    %464 = vmatpush.msra.mxu0 %v89
    %465 = vmatmul.f32.gmra.mxu0 %v447
    %v466 = vpop.f32.mrf.mxu0
    %v467 = vadd.f32 0.0, %v466
    %468 = vdwg.mxu0
    %470 = vset.pattern.permute.xlu0 0
    %471 = vperm.xlu0 %470, %v435
    %v472 = vpop.permute.xlu0 %471
    %v473 = vperm.slane %v472, %v283
    %v474 = vsel %vm307, %v473, 0
    %476 = vmatpush.msra.mxu0 0.0
    %477 = vmatpush.msra.mxu0 0.0
    %478 = vmatpush.msra.mxu0 0.0
    %479 = vmatpush.msra.mxu0 0.0
    %480 = vmatpush.msra.mxu0 0.0
    %481 = vmatpush.msra.mxu0 0.0
    %482 = vmatpush.msra.mxu0 0.0
    %483 = vmatpush.msra.mxu0 0.0
    %484 = vmatpush.msra.mxu0 0.0
    %485 = vmatpush.msra.mxu0 0.0
    %486 = vmatpush.msra.mxu0 0.0
    %487 = vmatpush.msra.mxu0 0.0
    %488 = vmatpush.msra.mxu0 0.0
    %489 = vmatpush.msra.mxu0 0.0
    %490 = vmatpush.msra.mxu0 0.0
    %491 = vmatpush.msra.mxu0 %v90
    %492 = vmatmul.f32.gmra.mxu0 %v474
    %v493 = vpop.f32.mrf.mxu0
    %v494 = vadd.f32 0.0, %v493
    %495 = vdwg.mxu0
    %497 = vset.pattern.permute.xlu0 0
    %498 = vperm.xlu0 %497, %v436
    %v499 = vpop.permute.xlu0 %498
    %v500 = vperm.slane %v499, %v283
    %v501 = vsel %vm307, %v500, 0
    %503 = vmatpush.msra.mxu0 0.0
    %504 = vmatpush.msra.mxu0 0.0
    %505 = vmatpush.msra.mxu0 0.0
    %506 = vmatpush.msra.mxu0 0.0
    %507 = vmatpush.msra.mxu0 0.0
    %508 = vmatpush.msra.mxu0 0.0
    %509 = vmatpush.msra.mxu0 0.0
    %510 = vmatpush.msra.mxu0 0.0
    %511 = vmatpush.msra.mxu0 0.0
    %512 = vmatpush.msra.mxu0 0.0
    %513 = vmatpush.msra.mxu0 0.0
    %514 = vmatpush.msra.mxu0 0.0
    %515 = vmatpush.msra.mxu0 0.0
    %516 = vmatpush.msra.mxu0 0.0
    %517 = vmatpush.msra.mxu0 0.0
    %518 = vmatpush.msra.mxu0 %v91
    %519 = vmatmul.f32.gmra.mxu0 %v501
    %v520 = vpop.f32.mrf.mxu0
    %v521 = vadd.f32 0.0, %v520
    %522 = vdwg.mxu0
    %524 = vset.pattern.permute.xlu0 0
    %525 = vperm.xlu0 %524, %v437
    %v526 = vpop.permute.xlu0 %525
    %v527 = vperm.slane %v526, %v283
    %v528 = vsel %vm307, %v527, 0
    %530 = vmatpush.msra.mxu0 0.0
    %531 = vmatpush.msra.mxu0 0.0
    %532 = vmatpush.msra.mxu0 0.0
    %533 = vmatpush.msra.mxu0 0.0
    %534 = vmatpush.msra.mxu0 0.0
    %535 = vmatpush.msra.mxu0 0.0
    %536 = vmatpush.msra.mxu0 0.0
    %537 = vmatpush.msra.mxu0 0.0
    %538 = vmatpush.msra.mxu0 0.0
    %539 = vmatpush.msra.mxu0 0.0
    %540 = vmatpush.msra.mxu0 0.0
    %541 = vmatpush.msra.mxu0 0.0
    %542 = vmatpush.msra.mxu0 0.0
    %543 = vmatpush.msra.mxu0 0.0
    %544 = vmatpush.msra.mxu0 0.0
    %545 = vmatpush.msra.mxu0 %v92
    %546 = vmatmul.f32.gmra.mxu0 %v528
    %v547 = vpop.f32.mrf.mxu0
    %v548 = vadd.f32 0.0, %v547
    %549 = vdwg.mxu0
    %551 = vset.pattern.permute.xlu0 0
    %552 = vperm.xlu0 %551, %v438
    %v553 = vpop.permute.xlu0 %552
    %v554 = vperm.slane %v553, %v283
    %v555 = vsel %vm307, %v554, 0
    %557 = vmatpush.msra.mxu0 0.0
    %558 = vmatpush.msra.mxu0 0.0
    %559 = vmatpush.msra.mxu0 0.0
    %560 = vmatpush.msra.mxu0 0.0
    %561 = vmatpush.msra.mxu0 0.0
    %562 = vmatpush.msra.mxu0 0.0
    %563 = vmatpush.msra.mxu0 0.0
    %564 = vmatpush.msra.mxu0 0.0
    %565 = vmatpush.msra.mxu0 0.0
    %566 = vmatpush.msra.mxu0 0.0
    %567 = vmatpush.msra.mxu0 0.0
    %568 = vmatpush.msra.mxu0 0.0
    %569 = vmatpush.msra.mxu0 0.0
    %570 = vmatpush.msra.mxu0 0.0
    %571 = vmatpush.msra.mxu0 0.0
    %572 = vmatpush.msra.mxu0 %v93
    %573 = vmatmul.f32.gmra.mxu0 %v555
    %v574 = vpop.f32.mrf.mxu0
    %v575 = vadd.f32 0.0, %v574
    %576 = vdwg.mxu0
    %578 = vset.pattern.permute.xlu0 0
    %579 = vperm.xlu0 %578, %v439
    %v580 = vpop.permute.xlu0 %579
    %v581 = vperm.slane %v580, %v283
    %v582 = vsel %vm307, %v581, 0
    %584 = vmatpush.msra.mxu0 0.0
    %585 = vmatpush.msra.mxu0 0.0
    %586 = vmatpush.msra.mxu0 0.0
    %587 = vmatpush.msra.mxu0 0.0
    %588 = vmatpush.msra.mxu0 0.0
    %589 = vmatpush.msra.mxu0 0.0
    %590 = vmatpush.msra.mxu0 0.0
    %591 = vmatpush.msra.mxu0 0.0
    %592 = vmatpush.msra.mxu0 0.0
    %593 = vmatpush.msra.mxu0 0.0
    %594 = vmatpush.msra.mxu0 0.0
    %595 = vmatpush.msra.mxu0 0.0
    %596 = vmatpush.msra.mxu0 0.0
    %597 = vmatpush.msra.mxu0 0.0
    %598 = vmatpush.msra.mxu0 0.0
    %599 = vmatpush.msra.mxu0 %v94
    %600 = vmatmul.f32.gmra.mxu0 %v582
    %v601 = vpop.f32.mrf.mxu0
    %v602 = vadd.f32 0.0, %v601
    %603 = vdwg.mxu0
    %605 = vset.pattern.permute.xlu0 0
    %606 = vperm.xlu0 %605, %v440
    %v607 = vpop.permute.xlu0 %606
    %v608 = vperm.slane %v607, %v283
    %v609 = vsel %vm307, %v608, 0
    %611 = vmatpush.msra.mxu0 0.0
    %612 = vmatpush.msra.mxu0 0.0
    %613 = vmatpush.msra.mxu0 0.0
    %614 = vmatpush.msra.mxu0 0.0
    %615 = vmatpush.msra.mxu0 0.0
    %616 = vmatpush.msra.mxu0 0.0
    %617 = vmatpush.msra.mxu0 0.0
    %618 = vmatpush.msra.mxu0 0.0
    %619 = vmatpush.msra.mxu0 0.0
    %620 = vmatpush.msra.mxu0 0.0
    %621 = vmatpush.msra.mxu0 0.0
    %622 = vmatpush.msra.mxu0 0.0
    %623 = vmatpush.msra.mxu0 0.0
    %624 = vmatpush.msra.mxu0 0.0
    %625 = vmatpush.msra.mxu0 0.0
    %626 = vmatpush.msra.mxu0 %v95
    %627 = vmatmul.f32.gmra.mxu0 %v609
    %v628 = vpop.f32.mrf.mxu0
    %v629 = vadd.f32 0.0, %v628
    %630 = vdwg.mxu0
    %632 = vset.pattern.permute.xlu0 0
    %633 = vperm.xlu0 %632, %v441
    %v634 = vpop.permute.xlu0 %633
    %v635 = vperm.slane %v634, %v283
    %v636 = vsel %vm307, %v635, 0
    %638 = vmatpush.msra.mxu0 0.0
    %639 = vmatpush.msra.mxu0 0.0
    %640 = vmatpush.msra.mxu0 0.0
    %641 = vmatpush.msra.mxu0 0.0
    %642 = vmatpush.msra.mxu0 0.0
    %643 = vmatpush.msra.mxu0 0.0
    %644 = vmatpush.msra.mxu0 0.0
    %645 = vmatpush.msra.mxu0 0.0
    %646 = vmatpush.msra.mxu0 0.0
    %647 = vmatpush.msra.mxu0 0.0
    %648 = vmatpush.msra.mxu0 0.0
    %649 = vmatpush.msra.mxu0 0.0
    %650 = vmatpush.msra.mxu0 0.0
    %651 = vmatpush.msra.mxu0 0.0
    %652 = vmatpush.msra.mxu0 0.0
    %653 = vmatpush.msra.mxu0 %v96
    %654 = vmatmul.f32.gmra.mxu0 %v636
    %v655 = vpop.f32.mrf.mxu0
    %v656 = vadd.f32 0.0, %v655
    %657 = vdwg.mxu0
    %v666 = vrot.slane %v494, 7
    %v667 = vsel %vm292, %v666, %v467
    %v668 = vrot.slane %v521, 6
    %v669 = vsel %vm294, %v668, %v667
    %v670 = vrot.slane %v548, 5
    %v671 = vsel %vm296, %v670, %v669
    %v672 = vrot.slane %v575, 4
    %v673 = vsel %vm298, %v672, %v671
    %v674 = vrot.slane %v602, 3
    %v675 = vsel %vm300, %v674, %v673
    %v676 = vrot.slane %v629, 2
    %v677 = vsel %vm302, %v676, %v675
    %v678 = vrot.slane %v656, 1
    %v679 = vsel %vm304, %v678, %v677
    %681 = vst.msk [vmem:[#allocation10] sm:$0xff] %vm105, %v679
    %v682 = vsel %vm292, %v473, %v446
    %v683 = vsel %vm294, %v500, %v682
    %v684 = vsel %vm296, %v527, %v683
    %v685 = vsel %vm298, %v554, %v684
    %v686 = vsel %vm300, %v581, %v685
    %v687 = vsel %vm302, %v608, %v686
    %v688 = vsel %vm304, %v635, %v687
    %690 = vst.msk [vmem:[#allocation11] sm:$0xff] %vm307, %v688
    // Predicated region
    $region42: #{tpu_custom_call.1} parent=1 // pred_check
      _
    $region43: #{tpu_custom_call.1} parent=1 // pred_check_branch
      %692 = sbr.rel (0) target = $region45
    $region44: #{tpu_custom_call.1} parent=1 // pred_region
      %694 = vsyncadd [#allocation4], 0
      %s696 = sshll.u32 [#allocation10], 4
      %s697 = int_to_ptr.vmem [resolvable:$true] %s696
      %s698 = sshll.u32 %s6, 4
      %s699 = int_to_ptr.hbm [resolvable:$true] %s698
      %701 = dma.vmem_to_hbm [thread:$0]  %s697, 128, %s699, [#allocation4]
    $region45: #{tpu_custom_call.1} parent=1 // pred_fallthru
      _
    // Predicated region
    $region46: #{tpu_custom_call.1} parent=1 // pred_check
      _
    $region47: #{tpu_custom_call.1} parent=1 // pred_check_branch
      %703 = sbr.rel (0) target = $region49
    $region48: #{tpu_custom_call.1} parent=1 // pred_region
      %705 = vsyncadd [#allocation12], 0
      %s707 = sshll.u32 [#allocation11], 4
      %s708 = int_to_ptr.vmem [resolvable:$true] %s707
      %s709 = sshll.u32 %s7, 4
      %s710 = int_to_ptr.hbm [resolvable:$true] %s709
      %712 = dma.vmem_to_hbm [thread:$0]  %s708, 128, %s710, [#allocation12]
    $region49: #{tpu_custom_call.1} parent=1 // pred_fallthru
      _
    // Predicated region
    $region50: #{tpu_custom_call.1} parent=1 // pred_check
      _
    $region51: #{tpu_custom_call.1} parent=1 // pred_check_branch
      %714 = sbr.rel (0) target = $region53
    $region52: #{tpu_custom_call.1} parent=1 // pred_region
      %716 = dma.done [#allocation4], 128
    $region53: #{tpu_custom_call.1} parent=1 // pred_fallthru
      _
    // Predicated region
    $region54: #{tpu_custom_call.1} parent=1 // pred_check
      _
    $region55: #{tpu_custom_call.1} parent=1 // pred_check_branch
      %718 = sbr.rel (0) target = $region57
    $region56: #{tpu_custom_call.1} parent=1 // pred_region
      %720 = dma.done [#allocation12], 128
    $region57: #{tpu_custom_call.1} parent=1 // pred_fallthru
      _
    %721 = vsyncpa [#allocation3], 1
    %722 = vsyncpa [#allocation6], 1
    %723 = vsyncpa [#allocation9], 1
    %724 = vsyncpa [#allocation4], 1
    %725 = vsyncpa [#allocation12], 1

</llo_original>
